<compile_context>
chip_gen: v7x
topology: tpu7x:2x2x1
jax: 0.10.0
libtpu: 0.0.40
codegen_flags: <defaults>
</compile_context>

<pallas_src>
import jax
import jax.numpy as jnp
from jax.experimental import pallas as pl
from jax.experimental.pallas import tpu as pltpu

KSIZE = 7
PAD = KSIZE // 2


def _round_up(x, m):
    return (x + m - 1) // m * m


def _spatial_attention_kernel(t_ref, x_ref, o_ref, planes_ref):
    # t_ref      : (7, 2*Wp, Wp) f32 precomputed banded conv RHS (resident VMEM)
    # x_ref      : (bt, C, H, W)     raw (unpadded) input block
    # o_ref      : (bt, H, Wp)       lane-dense output block
    # planes_ref : (Hp, 2*Wp) f32    scratch: [mean | max] zero-haloed planes
    bt, C, H, W = x_ref.shape
    Hp, Wp2 = planes_ref.shape
    Wp = Wp2 // 2
    bot = Hp - H - PAD

    # Zero once per grid step: the lane-padding columns ([W:Wp) and [Wp+W:2Wp))
    # are masked by zero rows in t_ref, but NaN garbage * 0 would still poison
    # the MXU accumulation, so keep them explicitly zero.
    planes_ref[...] = jnp.zeros_like(planes_ref)

    ztop = jnp.zeros((PAD, W), jnp.float32)
    zbot = jnp.zeros((bot, W), jnp.float32)

    for b in range(bt):  # bt is kept small by the wrapper (bounded static unroll)
        # ---- Phase 1: channel reduction (mean + max) on the VMEM block. -----
        xb = x_ref[b].astype(jnp.float32)            # (C, H, W)
        mean = jnp.sum(xb, axis=0) * (1.0 / C)       # (H, W)
        mx = jnp.max(xb, axis=0)                     # (H, W)

        # Row (conv) halo via sublane concat + aligned stores; the lane halo is
        # handled by the centered band inside t_ref, so planes sit lane-aligned
        # at columns 0 (mean) and Wp (max).
        planes_ref[:, 0:W] = jnp.concatenate([ztop, mean, zbot], axis=0)
        planes_ref[:, Wp:Wp + W] = jnp.concatenate([ztop, mx, zbot], axis=0)

        # ---- Phase 2: 7x7 conv = 7 fused banded MXU matmuls (K = 2*Wp). -----
        # (planes[dh:dh+H, :] @ t_ref[dh])[i, j]
        #     = sum_dw w1[dh,dw]*mean_pad[i+dh, j+dw] + w2[dh,dw]*max_pad[i+dh, j+dw]
        acc = jnp.zeros((H, Wp), jnp.float32)
        for dh in range(KSIZE):
            lhs = planes_ref[dh:dh + H, :]           # (H, 2*Wp) sublane-shifted view
            acc = acc + jnp.dot(lhs, t_ref[dh],
                                preferred_element_type=jnp.float32)

        # ---- Phase 3: fused sigmoid + lane-dense store. ----------------------
        o_ref[b] = jax.nn.sigmoid(acc).astype(o_ref.dtype)


def _banded_rhs(w1, w2, W, Wp):
    """Stacked (7, 2*Wp, Wp) banded matrices (centered band, zero-halo aware).

    T[dh, k, j]      = w1[dh, k - j + PAD]  for |k - j| <= PAD and k < W
    T[dh, Wp + k, j] = w2[dh, k - j + PAD]  for |k - j| <= PAD and k < W
    All other entries are zero, so plane columns >= W (lane padding) never
    contribute and the left/right conv halo is implicit.
    """
    w1r = w1.reshape(KSIZE, KSIZE).astype(jnp.float32)
    w2r = w2.reshape(KSIZE, KSIZE).astype(jnp.float32)
    kk = jnp.arange(Wp)[:, None]          # source plane column
    jj = jnp.arange(Wp)[None, :]          # output column
    d = kk - jj + PAD                     # tap index, valid when in [0, 6]
    valid = (d >= 0) & (d < KSIZE) & (kk < W)
    dcl = jnp.clip(d, 0, KSIZE - 1)
    band1 = jnp.where(valid[None], w1r[:, dcl], 0.0)   # (7, Wp, Wp)
    band2 = jnp.where(valid[None], w2r[:, dcl], 0.0)   # (7, Wp, Wp)
    return jnp.concatenate([band1, band2], axis=1)      # (7, 2*Wp, Wp)


def _pick_block_batch(B, per_batch_bytes, target_bytes=4 << 20, max_bt=8):
    """Largest divisor of B with tile <= target, >= 2 grid steps, bounded unroll."""
    bb = max(1, min(B, max_bt, target_bytes // max(per_batch_bytes, 1)))
    if B >= 2:
        bb = min(bb, max(B // 2, 1))   # keep >= 2 grid steps (pipelining / megacore)
    bb = max(int(bb), 1)
    while B % bb:
        bb -= 1
    return bb


@jax.jit
def spatial_attention(x, w1, w2):
    """x: [B, C, H, W]; w1, w2: [1, 1, 7, 7] conv weights. Returns [B, 1, H, W]."""
    B, C, H, W = x.shape
    Hp = _round_up(H + 2 * PAD, 8)     # sublane-friendly plane height (with row halo)
    Wp = _round_up(W, 128)             # lane-dense width (column halo folded into T)

    t = _banded_rhs(w1, w2, W, Wp)     # (7, 2*Wp, Wp) f32, resident across grid steps

    in_bytes = x.dtype.itemsize
    bt = _pick_block_batch(B, C * H * W * in_bytes)
    grid = (B // bt,)

    # VMEM budget from the actual buffers (no hard-coded 32 MiB).
    need = (2 * bt * C * H * W * in_bytes          # x block (double-buffered)
            + 2 * bt * H * Wp * x.dtype.itemsize   # output block (double-buffered)
            + 2 * KSIZE * 2 * Wp * Wp * 4          # banded RHS
            + Hp * 2 * Wp * 4)                     # planes scratch
    vmem_limit = int(max(need + (8 << 20), 16 << 20))

    out = pl.pallas_call(
        _spatial_attention_kernel,
        out_shape=jax.ShapeDtypeStruct((B, H, Wp), x.dtype),
        grid=grid,
        in_specs=[
            pl.BlockSpec((KSIZE, 2 * Wp, Wp), lambda g: (0, 0, 0)),  # T, fetched once
            pl.BlockSpec((bt, C, H, W), lambda g: (g, 0, 0, 0)),     # raw x tile
        ],
        out_specs=pl.BlockSpec((bt, H, Wp), lambda g: (g, 0, 0)),
        scratch_shapes=[pltpu.VMEM((Hp, 2 * Wp), jnp.float32)],
        compiler_params=pltpu.CompilerParams(
            dimension_semantics=("parallel",),
            vmem_limit_bytes=vmem_limit,
        ),
    )(t, x)

    # Drop lane padding, restore NCHW [B, 1, H, W].
    return out[:, None, :, :W]


def _reference(x, w1, w2):
    # Plain-JAX reference mirroring the PyTorch forward, for validation.
    avg = jnp.mean(x, axis=1, keepdims=True)
    mx = jnp.max(x, axis=1, keepdims=True)
    dn = ("NCHW", "OIHW", "NCHW")
    x1 = jax.lax.conv_general_dilated(avg, w1, (1, 1), [(PAD, PAD), (PAD, PAD)],
                                      dimension_numbers=dn,
                                      precision=jax.lax.Precision.HIGHEST)
    x2 = jax.lax.conv_general_dilated(mx, w2, (1, 1), [(PAD, PAD), (PAD, PAD)],
                                      dimension_numbers=dn,
                                      precision=jax.lax.Precision.HIGHEST)
    return jax.nn.sigmoid(x1 + x2)


if __name__ == "__main__":
    key = jax.random.PRNGKey(0)
    kx, k1, k2 = jax.random.split(key, 3)

    B, C, H, W = 2, 4, 16, 16
    x = jax.random.normal(kx, (B, C, H, W), dtype=jnp.float32)

    # Deterministic Conv2d(1, 1, 7, bias=False) weights (shape [out, in, kH, kW]).
    fan_in = 1 * KSIZE * KSIZE
    bound = 1.0 / (fan_in ** 0.5)
    w1 = jax.random.uniform(k1, (1, 1, KSIZE, KSIZE), jnp.float32, -bound, bound)
    w2 = jax.random.uniform(k2, (1, 1, KSIZE, KSIZE), jnp.float32, -bound, bound)

    out = jax.block_until_ready(spatial_attention(x, w1, w2))
    ref = jax.block_until_ready(_reference(x, w1, w2))

    assert out.shape == (B, 1, H, W), out.shape
    # Tolerance covers MXU pass-precision / accumulation-order differences of the
    # in-kernel f32 matmuls vs. the HIGHEST-precision XLA reference convolution;
    # any structural/indexing error would be O(0.1) and still be caught.
    max_err = float(jnp.max(jnp.abs(out - ref)))
    assert jnp.allclose(out, ref, atol=2e-3, rtol=2e-3), max_err

    print("KERNEL_OK")
</pallas_src>

<mosaic_0001>
module attributes {stable_mosaic.version = 11 : i64} {
  func.func @_spatial_attention_kernel(%arg0: i32, %arg1: memref<7x256x128xf32, #tpu.memory_space<vmem>>, %arg2: memref<1x4x16x16xf32, #tpu.memory_space<vmem>>, %arg3: memref<1x16x128xf32, #tpu.memory_space<vmem>>, %arg4: memref<24x256xf32, #tpu.memory_space<vmem>>) attributes {dimension_semantics = [#tpu.dimension_semantics<parallel>], iteration_bounds = array<i64: 2>, scalar_prefetch = 0 : i64, scratch_operands = 1 : i64, tpu.core_type = #tpu.core_type<tc>, window_params = [{pipeline_mode = #tpu.pipeline_mode<synchronous>, transform_indices = @transform_0, window_bounds = array<i64: 7, 256, 128>}, {transform_indices = @transform_1, window_bounds = array<i64: 1, 4, 16, 16>}, {transform_indices = @transform_2, window_bounds = array<i64: 1, 16, 128>}]} {
    %cst = arith.constant 0.000000e+00 : f32
    %0 = vector.broadcast %cst : f32 to vector<24x256xf32>
    %c0 = arith.constant 0 : index
    %c0_0 = arith.constant 0 : index
    %1 = vector.load %arg4[%c0, %c0_0] : memref<24x256xf32, #tpu.memory_space<vmem>>, vector<24x256xf32>
    tpu.vector_store %arg4[%c0, %c0_0], %0 {strides = array<i32>} : memref<24x256xf32, #tpu.memory_space<vmem>>, vector<24x256xf32>,
    %cst_1 = arith.constant 0.000000e+00 : f32
    %2 = vector.broadcast %cst_1 : f32 to vector<3x16xf32>
    %cst_2 = arith.constant 0.000000e+00 : f32
    %3 = vector.broadcast %cst_2 : f32 to vector<5x16xf32>
    %c0_3 = arith.constant 0 : index
    %c0_4 = arith.constant 0 : index
    %c0_5 = arith.constant 0 : index
    %c0_6 = arith.constant 0 : index
    %4 = vector.load %arg2[%c0_3, %c0_4, %c0_5, %c0_6] : memref<1x4x16x16xf32, #tpu.memory_space<vmem>>, vector<1x4x16x16xf32>
    %5 = vector.shape_cast %4 : vector<1x4x16x16xf32> to vector<4x16x16xf32>
    %cst_7 = arith.constant dense<0.000000e+00> : vector<16x16xf32>
    %6 = vector.multi_reduction <add>, %5, %cst_7 [0] : vector<4x16x16xf32> to vector<16x16xf32>
    %cst_8 = arith.constant 2.500000e-01 : f32
    %7 = vector.broadcast %cst_8 : f32 to vector<16x16xf32>
    %8 = arith.mulf %6, %7 : vector<16x16xf32>
    %cst_9 = arith.constant dense<0xFF800000> : vector<16x16xf32>
    %9 = vector.multi_reduction <maximumf>, %5, %cst_9 [0] : vector<4x16x16xf32> to vector<16x16xf32>
    %10 = tpu.concatenate %2, %8, %3 in 0 : vector<3x16xf32>, vector<16x16xf32>, vector<5x16xf32> -> vector<24x16xf32>
    %c0_10 = arith.constant 0 : index
    %c0_11 = arith.constant 0 : index
    %11 = vector.load %arg4[%c0_10, %c0_11] : memref<24x256xf32, #tpu.memory_space<vmem>>, vector<24x16xf32>
    tpu.vector_store %arg4[%c0_10, %c0_11], %10 {strides = array<i32>} : memref<24x256xf32, #tpu.memory_space<vmem>>, vector<24x16xf32>,
    %12 = tpu.concatenate %2, %9, %3 in 0 : vector<3x16xf32>, vector<16x16xf32>, vector<5x16xf32> -> vector<24x16xf32>
    %c0_12 = arith.constant 0 : index
    %c128 = arith.constant 128 : index
    %13 = vector.load %arg4[%c0_12, %c128] : memref<24x256xf32, #tpu.memory_space<vmem>>, vector<24x16xf32>
    tpu.vector_store %arg4[%c0_12, %c128], %12 {strides = array<i32>} : memref<24x256xf32, #tpu.memory_space<vmem>>, vector<24x16xf32>,
    %cst_13 = arith.constant 0.000000e+00 : f32
    %14 = vector.broadcast %cst_13 : f32 to vector<16x128xf32>
    %c0_14 = arith.constant 0 : index
    %c0_15 = arith.constant 0 : index
    %15 = vector.load %arg4[%c0_14, %c0_15] : memref<24x256xf32, #tpu.memory_space<vmem>>, vector<16x256xf32>
    %c0_16 = arith.constant 0 : index
    %c0_17 = arith.constant 0 : index
    %c0_18 = arith.constant 0 : index
    %16 = vector.load %arg1[%c0_16, %c0_17, %c0_18] : memref<7x256x128xf32, #tpu.memory_space<vmem>>, vector<1x256x128xf32>
    %17 = vector.shape_cast %16 : vector<1x256x128xf32> to vector<256x128xf32>
    %cst_19 = arith.constant dense<0.000000e+00> : vector<16x128xf32>
    %18 = tpu.matmul %15, %17, %cst_19 {dimension_numbers = #tpu.dot_dimension_numbers<[1], [0], [0], [1], [0, 0, 1, 1], [], []>} : vector<16x256xf32>, vector<256x128xf32>, vector<16x128xf32> -> vector<16x128xf32>
    %19 = arith.addf %14, %18 : vector<16x128xf32>
    %c1 = arith.constant 1 : index
    %c0_20 = arith.constant 0 : index
    %20 = vector.load %arg4[%c1, %c0_20] : memref<24x256xf32, #tpu.memory_space<vmem>>, vector<16x256xf32>
    %c1_21 = arith.constant 1 : index
    %c0_22 = arith.constant 0 : index
    %c0_23 = arith.constant 0 : index
    %21 = vector.load %arg1[%c1_21, %c0_22, %c0_23] : memref<7x256x128xf32, #tpu.memory_space<vmem>>, vector<1x256x128xf32>
    %22 = vector.shape_cast %21 : vector<1x256x128xf32> to vector<256x128xf32>
    %cst_24 = arith.constant dense<0.000000e+00> : vector<16x128xf32>
    %23 = tpu.matmul %20, %22, %cst_24 {dimension_numbers = #tpu.dot_dimension_numbers<[1], [0], [0], [1], [0, 0, 1, 1], [], []>} : vector<16x256xf32>, vector<256x128xf32>, vector<16x128xf32> -> vector<16x128xf32>
    %24 = arith.addf %19, %23 : vector<16x128xf32>
    %c2 = arith.constant 2 : index
    %c0_25 = arith.constant 0 : index
    %25 = vector.load %arg4[%c2, %c0_25] : memref<24x256xf32, #tpu.memory_space<vmem>>, vector<16x256xf32>
    %c2_26 = arith.constant 2 : index
    %c0_27 = arith.constant 0 : index
    %c0_28 = arith.constant 0 : index
    %26 = vector.load %arg1[%c2_26, %c0_27, %c0_28] : memref<7x256x128xf32, #tpu.memory_space<vmem>>, vector<1x256x128xf32>
    %27 = vector.shape_cast %26 : vector<1x256x128xf32> to vector<256x128xf32>
    %cst_29 = arith.constant dense<0.000000e+00> : vector<16x128xf32>
    %28 = tpu.matmul %25, %27, %cst_29 {dimension_numbers = #tpu.dot_dimension_numbers<[1], [0], [0], [1], [0, 0, 1, 1], [], []>} : vector<16x256xf32>, vector<256x128xf32>, vector<16x128xf32> -> vector<16x128xf32>
    %29 = arith.addf %24, %28 : vector<16x128xf32>
    %c3 = arith.constant 3 : index
    %c0_30 = arith.constant 0 : index
    %30 = vector.load %arg4[%c3, %c0_30] : memref<24x256xf32, #tpu.memory_space<vmem>>, vector<16x256xf32>
    %c3_31 = arith.constant 3 : index
    %c0_32 = arith.constant 0 : index
    %c0_33 = arith.constant 0 : index
    %31 = vector.load %arg1[%c3_31, %c0_32, %c0_33] : memref<7x256x128xf32, #tpu.memory_space<vmem>>, vector<1x256x128xf32>
    %32 = vector.shape_cast %31 : vector<1x256x128xf32> to vector<256x128xf32>
    %cst_34 = arith.constant dense<0.000000e+00> : vector<16x128xf32>
    %33 = tpu.matmul %30, %32, %cst_34 {dimension_numbers = #tpu.dot_dimension_numbers<[1], [0], [0], [1], [0, 0, 1, 1], [], []>} : vector<16x256xf32>, vector<256x128xf32>, vector<16x128xf32> -> vector<16x128xf32>
    %34 = arith.addf %29, %33 : vector<16x128xf32>
    %c4 = arith.constant 4 : index
    %c0_35 = arith.constant 0 : index
    %35 = vector.load %arg4[%c4, %c0_35] : memref<24x256xf32, #tpu.memory_space<vmem>>, vector<16x256xf32>
    %c4_36 = arith.constant 4 : index
    %c0_37 = arith.constant 0 : index
    %c0_38 = arith.constant 0 : index
    %36 = vector.load %arg1[%c4_36, %c0_37, %c0_38] : memref<7x256x128xf32, #tpu.memory_space<vmem>>, vector<1x256x128xf32>
    %37 = vector.shape_cast %36 : vector<1x256x128xf32> to vector<256x128xf32>
    %cst_39 = arith.constant dense<0.000000e+00> : vector<16x128xf32>
    %38 = tpu.matmul %35, %37, %cst_39 {dimension_numbers = #tpu.dot_dimension_numbers<[1], [0], [0], [1], [0, 0, 1, 1], [], []>} : vector<16x256xf32>, vector<256x128xf32>, vector<16x128xf32> -> vector<16x128xf32>
    %39 = arith.addf %34, %38 : vector<16x128xf32>
    %c5 = arith.constant 5 : index
    %c0_40 = arith.constant 0 : index
    %40 = vector.load %arg4[%c5, %c0_40] : memref<24x256xf32, #tpu.memory_space<vmem>>, vector<16x256xf32>
    %c5_41 = arith.constant 5 : index
    %c0_42 = arith.constant 0 : index
    %c0_43 = arith.constant 0 : index
    %41 = vector.load %arg1[%c5_41, %c0_42, %c0_43] : memref<7x256x128xf32, #tpu.memory_space<vmem>>, vector<1x256x128xf32>
    %42 = vector.shape_cast %41 : vector<1x256x128xf32> to vector<256x128xf32>
    %cst_44 = arith.constant dense<0.000000e+00> : vector<16x128xf32>
    %43 = tpu.matmul %40, %42, %cst_44 {dimension_numbers = #tpu.dot_dimension_numbers<[1], [0], [0], [1], [0, 0, 1, 1], [], []>} : vector<16x256xf32>, vector<256x128xf32>, vector<16x128xf32> -> vector<16x128xf32>
    %44 = arith.addf %39, %43 : vector<16x128xf32>
    %c6 = arith.constant 6 : index
    %c0_45 = arith.constant 0 : index
    %45 = vector.load %arg4[%c6, %c0_45] : memref<24x256xf32, #tpu.memory_space<vmem>>, vector<16x256xf32>
    %c6_46 = arith.constant 6 : index
    %c0_47 = arith.constant 0 : index
    %c0_48 = arith.constant 0 : index
    %46 = vector.load %arg1[%c6_46, %c0_47, %c0_48] : memref<7x256x128xf32, #tpu.memory_space<vmem>>, vector<1x256x128xf32>
    %47 = vector.shape_cast %46 : vector<1x256x128xf32> to vector<256x128xf32>
    %cst_49 = arith.constant dense<0.000000e+00> : vector<16x128xf32>
    %48 = tpu.matmul %45, %47, %cst_49 {dimension_numbers = #tpu.dot_dimension_numbers<[1], [0], [0], [1], [0, 0, 1, 1], [], []>} : vector<16x256xf32>, vector<256x128xf32>, vector<16x128xf32> -> vector<16x128xf32>
    %49 = arith.addf %44, %48 : vector<16x128xf32>
    %50 = arith.negf %49 : vector<16x128xf32>
    %51 = math.exp %50 : vector<16x128xf32>
    %cst_50 = arith.constant 1.000000e+00 : f32
    %52 = vector.broadcast %cst_50 : f32 to vector<16x128xf32>
    %53 = arith.addf %52, %51 : vector<16x128xf32>
    %54 = arith.divf %52, %53 : vector<16x128xf32>
    %c0_51 = arith.constant 0 : index
    %c0_52 = arith.constant 0 : index
    %c0_53 = arith.constant 0 : index
    %55 = vector.load %arg3[%c0_51, %c0_52, %c0_53] : memref<1x16x128xf32, #tpu.memory_space<vmem>>, vector<1x16x128xf32>
    %56 = vector.shape_cast %55 : vector<1x16x128xf32> to vector<16x128xf32>
    %57 = vector.shape_cast %54 : vector<16x128xf32> to vector<1x16x128xf32>
    tpu.vector_store %arg3[%c0_51, %c0_52, %c0_53], %57 {strides = array<i32>} : memref<1x16x128xf32, #tpu.memory_space<vmem>>, vector<1x16x128xf32>,
    return
  }
  func.func @transform_0(%arg0: i32) -> (i32, i32, i32) {
    %c0_i32 = arith.constant 0 : i32
    %c0_i32_0 = arith.constant 0 : i32
    %c0_i32_1 = arith.constant 0 : i32
    %c0_i32_2 = arith.constant 0 : i32
    return %c0_i32, %c0_i32_0, %c0_i32_1 : i32, i32, i32
  }
  func.func @transform_1(%arg0: i32) -> (i32, i32, i32, i32) {
    %c0_i32 = arith.constant 0 : i32
    %c0_i32_0 = arith.constant 0 : i32
    %c0_i32_1 = arith.constant 0 : i32
    %c0_i32_2 = arith.constant 0 : i32
    return %arg0, %c0_i32, %c0_i32_0, %c0_i32_1 : i32, i32, i32, i32
  }
  func.func @transform_2(%arg0: i32) -> (i32, i32, i32) {
    %c0_i32 = arith.constant 0 : i32
    %c0_i32_0 = arith.constant 0 : i32
    %c0_i32_1 = arith.constant 0 : i32
    return %arg0, %c0_i32, %c0_i32_0 : i32, i32, i32
  }
}

</mosaic_0001>

<llo_original>
// kernel: spatial_attention.1
$region0: #{spatial_attention.1}
  #allocation0 [shape = 'u32[]', space=smem, size = 0x4, offset = 0x4, fixed_abs, tag = 'smem constant byte address 0x4 - core index']
  #allocation1 [shape = 'u32[144,128]{1,0:T(1,128)}', space=vmem, size = 0x12000, scoped, tag = 'internal scratch']
  #allocation2 [shape = 'f32[24,256]{1,0:T(8,128)}', space=vmem, size = 0x6000, scoped, tag = 'scratch operand']
  %s0 = inlined_call_operand.vmem [shape: f32[7,256,128], index: 0, kind: input, shape index: {}]
  %s1 = inlined_call_operand.vmem [shape: f32[2,4,16,16], index: 1, kind: input, shape index: {}]
  %s2 = inlined_call_operand.vmem [shape: f32[2,16,128], index: 2, kind: output, shape index: {}]
  %s3 = sld [smem:[#allocation0]]
  $region41: #{spatial_attention.1} parent=0
    _
  %s5 = ssub.s32 1, %s3
  %s6 = scalar_select 0, %s5, %s3
  loop: start=0, step=1, limit=4
  $region2: #{spatial_attention.1} parent=0 // loop_pre_header
    _
  $region3: #{spatial_attention.1} parent=0 // loop_header
    %s8 = sphi 0, %s12
    %p9 = scmp.ge.s32.totalorder %s8, 4
    %s16 = sphi 0, %s16
    %s18 = sphi 0, %s16
    %s19 = sphi 0, %s18
    %s33 = sphi 0, %s19
    %s39 = sphi 0, %s41
    %s42 = sphi 0, %s39
    %s43 = sphi 0, %s42
    %s59 = sphi 0, %s43
    %s65 = sphi 0, %s67
    %s68 = sphi 0, %s65
    %s69 = sphi 0, %s68
    %s85 = sphi 0, %s69
  $region4: #{spatial_attention.1} parent=0 // loop_header_branch
    %11 = sbr.rel (%p9) target = $region8
  $region5: #{spatial_attention.1} parent=0 // loop_body
    %s13 = ssub.s32 %s8, 1
    %s14 = ssub.s32 %s8, 2
    %s15 = sadd.s32 %s8, 1
    %s17 = sadd.s32 %s16, 1
    %p20 = scmp.eq.s32.totalorder %s8, 1
    %p21 = scmp.ne.s32.totalorder %s16, %s18
    %p22 = scmp.eq.s32.totalorder %s8, 0
    %p23 = por %p21, %p22
    %p24 = scmp.ne.s32.totalorder %s16, %s18
    %p25 = scmp.eq.s32.totalorder %s13, 1
    %p26 = por %p24, %p25
    %p27 = scmp.ne.s32.totalorder %s18, %s19
    %p28 = scmp.eq.s32.totalorder %s13, 0
    %p29 = por %p27, %p28
    %p30 = scmp.ne.s32.totalorder %s18, %s19
    %p31 = scmp.eq.s32.totalorder %s14, 1
    %p32 = por %p30, %p31
    %p34 = scmp.ne.s32.totalorder %s19, %s33
    %p35 = scmp.eq.s32.totalorder %s14, 0
    %p36 = por %p34, %p35
    %s37 = ssub.s32 %s8, %s15
    %p38 = scmp.eq.s32.totalorder %s37, 0
    %s40 = sadd.s32 %s39, 1
    %s41 = scalar_select %p38, %s39, %s40
    %p44 = pneg %p38
    %p45 = scmp.eq.s32.totalorder %s8, 1
    %p46 = por %p44, %p45
    %p47 = scmp.ne.s32.totalorder %s39, %s42
    %p48 = scmp.eq.s32.totalorder %s8, 0
    %p49 = por %p47, %p48
    %p50 = scmp.ne.s32.totalorder %s39, %s42
    %p51 = scmp.eq.s32.totalorder %s13, 1
    %p52 = por %p50, %p51
    %p53 = scmp.ne.s32.totalorder %s42, %s43
    %p54 = scmp.eq.s32.totalorder %s13, 0
    %p55 = por %p53, %p54
    %p56 = scmp.ne.s32.totalorder %s42, %s43
    %p57 = scmp.eq.s32.totalorder %s14, 1
    %p58 = por %p56, %p57
    %p60 = scmp.ne.s32.totalorder %s43, %s59
    %p61 = scmp.eq.s32.totalorder %s14, 0
    %p62 = por %p60, %p61
    %s63 = ssub.s32 %s8, %s15
    %p64 = scmp.eq.s32.totalorder %s63, 0
    %s66 = sadd.s32 %s65, 1
    %s67 = scalar_select %p64, %s65, %s66
    %p70 = pneg %p64
    %p71 = scmp.eq.s32.totalorder %s8, 1
    %p72 = por %p70, %p71
    %p73 = scmp.ne.s32.totalorder %s65, %s68
    %p74 = scmp.eq.s32.totalorder %s8, 0
    %p75 = por %p73, %p74
    %p76 = scmp.ne.s32.totalorder %s65, %s68
    %p77 = scmp.eq.s32.totalorder %s13, 1
    %p78 = por %p76, %p77
    %p79 = scmp.ne.s32.totalorder %s68, %s69
    %p80 = scmp.eq.s32.totalorder %s13, 0
    %p81 = por %p79, %p80
    %p82 = scmp.ne.s32.totalorder %s68, %s69
    %p83 = scmp.eq.s32.totalorder %s14, 1
    %p84 = por %p82, %p83
    %p86 = scmp.ne.s32.totalorder %s69, %s85
    %p87 = scmp.eq.s32.totalorder %s14, 0
    %p88 = por %p86, %p87
    %p89 = scmp.le.s32.totalorder 1, %s8
    %p90 = scmp.lt.s32.totalorder %s8, 3
    %p91 = pnand %p89, %p90
    %p92 = pneg %p91
    // Predicated region
    $region9: #{spatial_attention.1} parent=5 // pred_check
      _
    $region10: #{spatial_attention.1} parent=5 // pred_check_branch
      %94 = sbr.rel (%p91) target = $region12
    $region11: #{spatial_attention.1} parent=5 // pred_region
      %s95 = ssub.s32 %s8, 1
      // Predicated region
      $region13: #{spatial_attention.1} parent=11 // pred_check
        %p96 = pneg %p29
      $region14: #{spatial_attention.1} parent=11 // pred_check_branch
        %98 = sbr.rel (%p96) target = $region16
      $region15: #{spatial_attention.1} parent=11 // pred_region
        _
      $region16: #{spatial_attention.1} parent=11 // pred_fallthru
        _
    $region12: #{spatial_attention.1} parent=5 // pred_fallthru
      _
    %p99 = scmp.lt.s32.totalorder %s8, 2
    // Predicated region
    $region17: #{spatial_attention.1} parent=5 // pred_check
      %p100 = pneg %p99
    $region18: #{spatial_attention.1} parent=5 // pred_check_branch
      %102 = sbr.rel (%p100) target = $region20
    $region19: #{spatial_attention.1} parent=5 // pred_region
      // Predicated region
      $region21: #{spatial_attention.1} parent=19 // pred_check
        %p103 = pneg %p49
      $region22: #{spatial_attention.1} parent=19 // pred_check_branch
        %105 = sbr.rel (%p103) target = $region24
      $region23: #{spatial_attention.1} parent=19 // pred_region
        %p106 = scmp.lt.s32.totalorder %s8, 1
        %s107 = scalar_select %p106, %s8, 1
        %s108 = smul.addr %s107, 8
        %s109 = smul.addr %s108, 8
        %s110 = scalar_lea.vmem %s1, %s109
      $region24: #{spatial_attention.1} parent=19 // pred_fallthru
        _
    $region20: #{spatial_attention.1} parent=5 // pred_fallthru
      _
    %p111 = scmp.le.s32.totalorder 1, %s8
    %p112 = scmp.lt.s32.totalorder %s8, 3
    %p113 = pnand %p111, %p112
    %p114 = pneg %p113
    // Predicated region
    $region25: #{spatial_attention.1} parent=5 // pred_check
      _
    $region26: #{spatial_attention.1} parent=5 // pred_check_branch
      %116 = sbr.rel (%p113) target = $region28
    $region27: #{spatial_attention.1} parent=5 // pred_region
      %s117 = ssub.s32 %s8, 1
      %p118 = pneg %p29
      %p119 = pneg %p26
      %p120 = scmp.lt.s32.totalorder %s13, 1
      %s121 = scalar_select %p120, %s13, 1
      %s122 = smul.addr %s121, 8
      %s123 = smul.addr %s122, 8
      %s124 = scalar_lea.vmem %s1, %s123
      %p125 = pneg %p55
      %p126 = pneg %p52
      %p127 = pneg %p81
      %p128 = pneg %p78
      %p129 = scmp.lt.s32.totalorder %s13, 1
      %s130 = scalar_select %p129, %s13, 1
      %s131 = smul.addr %s130, 2
      %s132 = smul.addr %s131, 8
      %s133 = scalar_lea.vmem %s2, %s132
      %p134 = scmp.lt.s32.totalorder %s13, 1
      %s135 = scalar_select %p134, %s13, 1
      %s136 = smul.addr %s135, 8
      %s137 = smul.addr %s136, 8
      %s138 = scalar_lea.vmem %s1, %s137
      %p139 = scmp.lt.s32.totalorder %s13, 1
      %s140 = scalar_select %p139, %s13, 1
      %s141 = smul.addr %s140, 2
      %s142 = smul.addr %s141, 8
      %s143 = scalar_lea.vmem %s2, %s142
      %144 = vst [vmem:[#allocation2] sm:$0xff] 0.0
      %145 = vst [vmem:[#allocation2 + $0x8] sm:$0xff] 0.0
      %146 = vst [vmem:[#allocation2 + $0x10] sm:$0xff] 0.0
      %147 = vst [vmem:[#allocation2 + $0x18] sm:$0xff] 0.0
      %148 = vst [vmem:[#allocation2 + $0x20] sm:$0xff] 0.0
      %149 = vst [vmem:[#allocation2 + $0x28] sm:$0xff] 0.0
      %v150 = vld [vmem:[%s138] sm:$0xff]
      %v151 = vld [vmem:[%s138 + $0x8] sm:$0xff]
      %v152 = vld [vmem:[%s138 + $0x10] sm:$0xff]
      %v153 = vld [vmem:[%s138 + $0x18] sm:$0xff]
      %v154 = vld [vmem:[%s138 + $0x20] sm:$0xff]
      %v155 = vld [vmem:[%s138 + $0x28] sm:$0xff]
      %v156 = vld [vmem:[%s138 + $0x30] sm:$0xff]
      %v157 = vld [vmem:[%s138 + $0x38] sm:$0xff]
      %vm158 = vcmask 130048
      %v159 = vsel %vm158, %v150, 0.0
      %v160 = vsel %vm158, %v152, 0.0
      %v161 = vadd.f32 %v159, %v160
      %v162 = vsel %vm158, %v154, 0.0
      %v163 = vadd.f32 %v161, %v162
      %v164 = vsel %vm158, %v156, 0.0
      %v165 = vadd.f32 %v163, %v164
      %v166 = vsel %vm158, %v151, 0.0
      %v167 = vsel %vm158, %v153, 0.0
      %v168 = vadd.f32 %v166, %v167
      %v169 = vsel %vm158, %v155, 0.0
      %v170 = vadd.f32 %v168, %v169
      %v171 = vsel %vm158, %v157, 0.0
      %v172 = vadd.f32 %v170, %v171
      %v173 = vmul.f32 %v165, 0.25
      %v174 = vmul.f32 %v172, 0.25
      %v175 = vsel %vm158, %v150, -inf
      %v176 = vsel %vm158, %v152, -inf
      %v177 = vsel %vm158, %v154, -inf
      %v178 = vmax.f32 %v175, %v177
      %v179 = vsel %vm158, %v156, -inf
      %v180 = vmax.f32 %v176, %v179
      %v181 = vmax.f32 %v178, %v180
      %v182 = vsel %vm158, %v151, -inf
      %v183 = vsel %vm158, %v153, -inf
      %v184 = vsel %vm158, %v155, -inf
      %v185 = vmax.f32 %v182, %v184
      %v186 = vsel %vm158, %v157, -inf
      %v187 = vmax.f32 %v183, %v186
      %v188 = vmax.f32 %v185, %v187
      %vm191 = vcmask 1042432
      %v192 = vrot.slane %v173, 5
      %v193 = vrot.slane %v174, 5
      %v194 = vsel %vm191, %v192, %v193
      %v198 = vsel %vm191, 0.0, %v192
      %v199 = vsel %vm191, %v193, 0.0
      %200 = vst.msk [vmem:[#allocation2] sm:$0xff] %vm158, %v198
      %201 = vst.msk [vmem:[#allocation2 + $0x10] sm:$0xff] %vm158, %v194
      %202 = vst.msk [vmem:[#allocation2 + $0x20] sm:$0xff] %vm158, %v199
      %v205 = vrot.slane %v181, 5
      %v206 = vrot.slane %v188, 5
      %v207 = vsel %vm191, %v205, %v206
      %v211 = vsel %vm191, 0.0, %v205
      %v212 = vsel %vm191, %v206, 0.0
      %213 = vst.msk [vmem:[#allocation2 + $0x8] sm:$0xff] %vm158, %v211
      %214 = vst.msk [vmem:[#allocation2 + $0x18] sm:$0xff] %vm158, %v207
      %215 = vst.msk [vmem:[#allocation2 + $0x28] sm:$0xff] %vm158, %v212
      %v216 = vld [vmem:[#allocation2] sm:$0xff]
      %v217 = vld [vmem:[#allocation2 + $0x8] sm:$0xff]
      %v218 = vld [vmem:[#allocation2 + $0x10] sm:$0xff]
      %v219 = vld [vmem:[#allocation2 + $0x18] sm:$0xff]
      %v220 = vld [vmem:[%s0] sm:$0xff]
      %v221 = vld [vmem:[%s0 + $0x8] sm:$0xff]
      %v222 = vld [vmem:[%s0 + $0x10] sm:$0xff]
      %v223 = vld [vmem:[%s0 + $0x18] sm:$0xff]
      %v224 = vld [vmem:[%s0 + $0x20] sm:$0xff]
      %v225 = vld [vmem:[%s0 + $0x28] sm:$0xff]
      %v226 = vld [vmem:[%s0 + $0x30] sm:$0xff]
      %v227 = vld [vmem:[%s0 + $0x38] sm:$0xff]
      %v228 = vld [vmem:[%s0 + $0x40] sm:$0xff]
      %v229 = vld [vmem:[%s0 + $0x48] sm:$0xff]
      %v230 = vld [vmem:[%s0 + $0x50] sm:$0xff]
      %v231 = vld [vmem:[%s0 + $0x58] sm:$0xff]
      %v232 = vld [vmem:[%s0 + $0x60] sm:$0xff]
      %v233 = vld [vmem:[%s0 + $0x68] sm:$0xff]
      %v234 = vld [vmem:[%s0 + $0x70] sm:$0xff]
      %v235 = vld [vmem:[%s0 + $0x78] sm:$0xff]
      %v236 = vld [vmem:[%s0 + $0x80] sm:$0xff]
      %v237 = vld [vmem:[%s0 + $0x88] sm:$0xff]
      %v238 = vld [vmem:[%s0 + $0x90] sm:$0xff]
      %v239 = vld [vmem:[%s0 + $0x98] sm:$0xff]
      %v240 = vld [vmem:[%s0 + $0xa0] sm:$0xff]
      %v241 = vld [vmem:[%s0 + $0xa8] sm:$0xff]
      %v242 = vld [vmem:[%s0 + $0xb0] sm:$0xff]
      %v243 = vld [vmem:[%s0 + $0xb8] sm:$0xff]
      %v244 = vld [vmem:[%s0 + $0xc0] sm:$0xff]
      %v245 = vld [vmem:[%s0 + $0xc8] sm:$0xff]
      %v246 = vld [vmem:[%s0 + $0xd0] sm:$0xff]
      %v247 = vld [vmem:[%s0 + $0xd8] sm:$0xff]
      %v248 = vld [vmem:[%s0 + $0xe0] sm:$0xff]
      %v249 = vld [vmem:[%s0 + $0xe8] sm:$0xff]
      %v250 = vld [vmem:[%s0 + $0xf0] sm:$0xff]
      %v251 = vld [vmem:[%s0 + $0xf8] sm:$0xff]
      %v252 = vld [vmem:[#allocation2] sm:$0xfe]
      %v253 = vld [vmem:[#allocation2 + $0x8] sm:$0xfe]
      %v254 = vld [vmem:[#allocation2 + $0x10] sm:$0xff]
      %v255 = vld [vmem:[#allocation2 + $0x18] sm:$0xff]
      %v256 = vld [vmem:[#allocation2 + $0x20] sm:$0x1]
      %v257 = vld [vmem:[#allocation2 + $0x28] sm:$0x1]
      %s258 = scalar_lea.vmem %s0, 256
      %v259 = vld [vmem:[%s258] sm:$0xff]
      %v260 = vld [vmem:[%s258 + $0x8] sm:$0xff]
      %v261 = vld [vmem:[%s258 + $0x10] sm:$0xff]
      %v262 = vld [vmem:[%s258 + $0x18] sm:$0xff]
      %v263 = vld [vmem:[%s258 + $0x20] sm:$0xff]
      %v264 = vld [vmem:[%s258 + $0x28] sm:$0xff]
      %v265 = vld [vmem:[%s258 + $0x30] sm:$0xff]
      %v266 = vld [vmem:[%s258 + $0x38] sm:$0xff]
      %v267 = vld [vmem:[%s258 + $0x40] sm:$0xff]
      %v268 = vld [vmem:[%s258 + $0x48] sm:$0xff]
      %v269 = vld [vmem:[%s258 + $0x50] sm:$0xff]
      %v270 = vld [vmem:[%s258 + $0x58] sm:$0xff]
      %v271 = vld [vmem:[%s258 + $0x60] sm:$0xff]
      %v272 = vld [vmem:[%s258 + $0x68] sm:$0xff]
      %v273 = vld [vmem:[%s258 + $0x70] sm:$0xff]
      %v274 = vld [vmem:[%s258 + $0x78] sm:$0xff]
      %v275 = vld [vmem:[%s258 + $0x80] sm:$0xff]
      %v276 = vld [vmem:[%s258 + $0x88] sm:$0xff]
      %v277 = vld [vmem:[%s258 + $0x90] sm:$0xff]
      %v278 = vld [vmem:[%s258 + $0x98] sm:$0xff]
      %v279 = vld [vmem:[%s258 + $0xa0] sm:$0xff]
      %v280 = vld [vmem:[%s258 + $0xa8] sm:$0xff]
      %v281 = vld [vmem:[%s258 + $0xb0] sm:$0xff]
      %v282 = vld [vmem:[%s258 + $0xb8] sm:$0xff]
      %v283 = vld [vmem:[%s258 + $0xc0] sm:$0xff]
      %v284 = vld [vmem:[%s258 + $0xc8] sm:$0xff]
      %v285 = vld [vmem:[%s258 + $0xd0] sm:$0xff]
      %v286 = vld [vmem:[%s258 + $0xd8] sm:$0xff]
      %v287 = vld [vmem:[%s258 + $0xe0] sm:$0xff]
      %v288 = vld [vmem:[%s258 + $0xe8] sm:$0xff]
      %v289 = vld [vmem:[%s258 + $0xf0] sm:$0xff]
      %v290 = vld [vmem:[%s258 + $0xf8] sm:$0xff]
      %vm297 = vcmask 1046528
      %v298 = vrot.slane %v252, 1
      %v299 = vrot.slane %v254, 1
      %v300 = vsel %vm297, %v298, %v299
      %v301 = vrot.slane %v253, 1
      %v302 = vrot.slane %v255, 1
      %v303 = vsel %vm297, %v301, %v302
      %v304 = vrot.slane %v256, 1
      %v305 = vsel %vm297, %v299, %v304
      %v306 = vrot.slane %v257, 1
      %v307 = vsel %vm297, %v302, %v306
      %312 = vmatprep.subr.mxu0 0.0
      %313 = vmatpush1.msra.mxu0 %v259
      %314 = vmatprep.subr.mxu0 0.0
      %315 = vmatpush1.msra.mxu0 %v260
      %316 = vmatprep.subr.mxu0 0.0
      %317 = vmatpush1.msra.mxu0 %v261
      %318 = vmatprep.subr.mxu0 0.0
      %319 = vmatpush1.msra.mxu0 %v262
      %320 = vmatprep.subr.mxu0 0.0
      %321 = vmatpush1.msra.mxu0 %v263
      %322 = vmatprep.subr.mxu0 0.0
      %323 = vmatpush1.msra.mxu0 %v264
      %324 = vmatprep.subr.mxu0 0.0
      %325 = vmatpush1.msra.mxu0 %v265
      %326 = vmatprep.subr.mxu0 0.0
      %327 = vmatpush1.msra.mxu0 %v266
      %328 = vmatprep.subr.mxu0 0.0
      %329 = vmatpush1.msra.mxu0 %v267
      %330 = vmatprep.subr.mxu0 0.0
      %331 = vmatpush1.msra.mxu0 %v268
      %332 = vmatprep.subr.mxu0 0.0
      %333 = vmatpush1.msra.mxu0 %v269
      %334 = vmatprep.subr.mxu0 0.0
      %335 = vmatpush1.msra.mxu0 %v270
      %336 = vmatprep.subr.mxu0 0.0
      %337 = vmatpush1.msra.mxu0 %v271
      %338 = vmatprep.subr.mxu0 0.0
      %339 = vmatpush1.msra.mxu0 %v272
      %340 = vmatprep.subr.mxu0 0.0
      %341 = vmatpush1.msra.mxu0 %v273
      %342 = vmatprep.subr.mxu0 0.0
      %343 = vmatpush1.msra.mxu0 %v274
      %344 = vmatprep.subr.mxu0 0.0
      %345 = vmatpush1.msra.mxu0 %v275
      %346 = vmatprep.subr.mxu0 0.0
      %347 = vmatpush1.msra.mxu0 %v276
      %348 = vmatprep.subr.mxu0 0.0
      %349 = vmatpush1.msra.mxu0 %v277
      %350 = vmatprep.subr.mxu0 0.0
      %351 = vmatpush1.msra.mxu0 %v278
      %352 = vmatprep.subr.mxu0 0.0
      %353 = vmatpush1.msra.mxu0 %v279
      %354 = vmatprep.subr.mxu0 0.0
      %355 = vmatpush1.msra.mxu0 %v280
      %356 = vmatprep.subr.mxu0 0.0
      %357 = vmatpush1.msra.mxu0 %v281
      %358 = vmatprep.subr.mxu0 0.0
      %359 = vmatpush1.msra.mxu0 %v282
      %360 = vmatprep.subr.mxu0 0.0
      %361 = vmatpush1.msra.mxu0 %v283
      %362 = vmatprep.subr.mxu0 0.0
      %363 = vmatpush1.msra.mxu0 %v284
      %364 = vmatprep.subr.mxu0 0.0
      %365 = vmatpush1.msra.mxu0 %v285
      %366 = vmatprep.subr.mxu0 0.0
      %367 = vmatpush1.msra.mxu0 %v286
      %368 = vmatprep.subr.mxu0 0.0
      %369 = vmatpush1.msra.mxu0 %v287
      %370 = vmatprep.subr.mxu0 0.0
      %371 = vmatpush1.msra.mxu0 %v288
      %372 = vmatprep.subr.mxu0 0.0
      %373 = vmatpush1.msra.mxu0 %v289
      %374 = vmatprep.subr.mxu0 0.0
      %375 = vmatpush1.msra.mxu0 %v290
      %376 = vmatprep.mubr.f32.mxu0 %v303
      %377 = vmatmul.mubr.f32.gmra.mrb[0].mxu0 %v300
      %v378 = vpop.f32.mrb[0].mxu0
      %v379 = vadd.f32 0.0, %v378
      %v380 = vpop.f32.mrb[0].mxu0
      %381 = vmatprep.mubr.f32.mxu0 %v307
      %382 = vmatmul.mubr.f32.gmra.mrb[0].mxu0 %v305
      %v383 = vpop.f32.mrb[0].mxu0
      %v384 = vadd.f32 0.0, %v383
      %v385 = vpop.f32.mrb[0].mxu0
      %386 = vdwg.mxu0
      %387 = vmatprep.subr.mxu0 0.0
      %388 = vmatpush1.msra.mxu0 %v220
      %389 = vmatprep.subr.mxu0 0.0
      %390 = vmatpush1.msra.mxu0 %v221
      %391 = vmatprep.subr.mxu0 0.0
      %392 = vmatpush1.msra.mxu0 %v222
      %393 = vmatprep.subr.mxu0 0.0
      %394 = vmatpush1.msra.mxu0 %v223
      %395 = vmatprep.subr.mxu0 0.0
      %396 = vmatpush1.msra.mxu0 %v224
      %397 = vmatprep.subr.mxu0 0.0
      %398 = vmatpush1.msra.mxu0 %v225
      %399 = vmatprep.subr.mxu0 0.0
      %400 = vmatpush1.msra.mxu0 %v226
      %401 = vmatprep.subr.mxu0 0.0
      %402 = vmatpush1.msra.mxu0 %v227
      %403 = vmatprep.subr.mxu0 0.0
      %404 = vmatpush1.msra.mxu0 %v228
      %405 = vmatprep.subr.mxu0 0.0
      %406 = vmatpush1.msra.mxu0 %v229
      %407 = vmatprep.subr.mxu0 0.0
      %408 = vmatpush1.msra.mxu0 %v230
      %409 = vmatprep.subr.mxu0 0.0
      %410 = vmatpush1.msra.mxu0 %v231
      %411 = vmatprep.subr.mxu0 0.0
      %412 = vmatpush1.msra.mxu0 %v232
      %413 = vmatprep.subr.mxu0 0.0
      %414 = vmatpush1.msra.mxu0 %v233
      %415 = vmatprep.subr.mxu0 0.0
      %416 = vmatpush1.msra.mxu0 %v234
      %417 = vmatprep.subr.mxu0 0.0
      %418 = vmatpush1.msra.mxu0 %v235
      %419 = vmatprep.subr.mxu0 0.0
      %420 = vmatpush1.msra.mxu0 %v236
      %421 = vmatprep.subr.mxu0 0.0
      %422 = vmatpush1.msra.mxu0 %v237
      %423 = vmatprep.subr.mxu0 0.0
      %424 = vmatpush1.msra.mxu0 %v238
      %425 = vmatprep.subr.mxu0 0.0
      %426 = vmatpush1.msra.mxu0 %v239
      %427 = vmatprep.subr.mxu0 0.0
      %428 = vmatpush1.msra.mxu0 %v240
      %429 = vmatprep.subr.mxu0 0.0
      %430 = vmatpush1.msra.mxu0 %v241
      %431 = vmatprep.subr.mxu0 0.0
      %432 = vmatpush1.msra.mxu0 %v242
      %433 = vmatprep.subr.mxu0 0.0
      %434 = vmatpush1.msra.mxu0 %v243
      %435 = vmatprep.subr.mxu0 0.0
      %436 = vmatpush1.msra.mxu0 %v244
      %437 = vmatprep.subr.mxu0 0.0
      %438 = vmatpush1.msra.mxu0 %v245
      %439 = vmatprep.subr.mxu0 0.0
      %440 = vmatpush1.msra.mxu0 %v246
      %441 = vmatprep.subr.mxu0 0.0
      %442 = vmatpush1.msra.mxu0 %v247
      %443 = vmatprep.subr.mxu0 0.0
      %444 = vmatpush1.msra.mxu0 %v248
      %445 = vmatprep.subr.mxu0 0.0
      %446 = vmatpush1.msra.mxu0 %v249
      %447 = vmatprep.subr.mxu0 0.0
      %448 = vmatpush1.msra.mxu0 %v250
      %449 = vmatprep.subr.mxu0 0.0
      %450 = vmatpush1.msra.mxu0 %v251
      %451 = vmatprep.mubr.f32.mxu0 %v217
      %452 = vmatmul.mubr.f32.gmra.mrb[0].mxu0 %v216
      %v453 = vpop.f32.mrb[0].mxu0
      %v454 = vadd.f32 %v379, %v453
      %v455 = vpop.f32.mrb[0].mxu0
      %456 = vmatprep.mubr.f32.mxu0 %v219
      %457 = vmatmul.mubr.f32.gmra.mrb[0].mxu0 %v218
      %v458 = vpop.f32.mrb[0].mxu0
      %v459 = vadd.f32 %v384, %v458
      %v460 = vpop.f32.mrb[0].mxu0
      %461 = vdwg.mxu0
      %v462 = vld [vmem:[#allocation2] sm:$0xfc]
      %v463 = vld [vmem:[#allocation2 + $0x8] sm:$0xfc]
      %v464 = vld [vmem:[#allocation2 + $0x20] sm:$0x3]
      %v465 = vld [vmem:[#allocation2 + $0x28] sm:$0x3]
      %s466 = scalar_lea.vmem %s0, 512
      %v467 = vld [vmem:[%s466] sm:$0xff]
      %v468 = vld [vmem:[%s466 + $0x8] sm:$0xff]
      %v469 = vld [vmem:[%s466 + $0x10] sm:$0xff]
      %v470 = vld [vmem:[%s466 + $0x18] sm:$0xff]
      %v471 = vld [vmem:[%s466 + $0x20] sm:$0xff]
      %v472 = vld [vmem:[%s466 + $0x28] sm:$0xff]
      %v473 = vld [vmem:[%s466 + $0x30] sm:$0xff]
      %v474 = vld [vmem:[%s466 + $0x38] sm:$0xff]
      %v475 = vld [vmem:[%s466 + $0x40] sm:$0xff]
      %v476 = vld [vmem:[%s466 + $0x48] sm:$0xff]
      %v477 = vld [vmem:[%s466 + $0x50] sm:$0xff]
      %v478 = vld [vmem:[%s466 + $0x58] sm:$0xff]
      %v479 = vld [vmem:[%s466 + $0x60] sm:$0xff]
      %v480 = vld [vmem:[%s466 + $0x68] sm:$0xff]
      %v481 = vld [vmem:[%s466 + $0x70] sm:$0xff]
      %v482 = vld [vmem:[%s466 + $0x78] sm:$0xff]
      %v483 = vld [vmem:[%s466 + $0x80] sm:$0xff]
      %v484 = vld [vmem:[%s466 + $0x88] sm:$0xff]
      %v485 = vld [vmem:[%s466 + $0x90] sm:$0xff]
      %v486 = vld [vmem:[%s466 + $0x98] sm:$0xff]
      %v487 = vld [vmem:[%s466 + $0xa0] sm:$0xff]
      %v488 = vld [vmem:[%s466 + $0xa8] sm:$0xff]
      %v489 = vld [vmem:[%s466 + $0xb0] sm:$0xff]
      %v490 = vld [vmem:[%s466 + $0xb8] sm:$0xff]
      %v491 = vld [vmem:[%s466 + $0xc0] sm:$0xff]
      %v492 = vld [vmem:[%s466 + $0xc8] sm:$0xff]
      %v493 = vld [vmem:[%s466 + $0xd0] sm:$0xff]
      %v494 = vld [vmem:[%s466 + $0xd8] sm:$0xff]
      %v495 = vld [vmem:[%s466 + $0xe0] sm:$0xff]
      %v496 = vld [vmem:[%s466 + $0xe8] sm:$0xff]
      %v497 = vld [vmem:[%s466 + $0xf0] sm:$0xff]
      %v498 = vld [vmem:[%s466 + $0xf8] sm:$0xff]
      %vm503 = vcmask 1045504
      %v504 = vrot.slane %v462, 2
      %v505 = vrot.slane %v254, 2
      %v506 = vsel %vm503, %v504, %v505
      %v507 = vrot.slane %v463, 2
      %v508 = vrot.slane %v255, 2
      %v509 = vsel %vm503, %v507, %v508
      %v510 = vrot.slane %v464, 2
      %v511 = vsel %vm503, %v505, %v510
      %v512 = vrot.slane %v465, 2
      %v513 = vsel %vm503, %v508, %v512
      %518 = vmatprep.subr.mxu0 0.0
      %519 = vmatpush1.msra.mxu0 %v467
      %520 = vmatprep.subr.mxu0 0.0
      %521 = vmatpush1.msra.mxu0 %v468
      %522 = vmatprep.subr.mxu0 0.0
      %523 = vmatpush1.msra.mxu0 %v469
      %524 = vmatprep.subr.mxu0 0.0
      %525 = vmatpush1.msra.mxu0 %v470
      %526 = vmatprep.subr.mxu0 0.0
      %527 = vmatpush1.msra.mxu0 %v471
      %528 = vmatprep.subr.mxu0 0.0
      %529 = vmatpush1.msra.mxu0 %v472
      %530 = vmatprep.subr.mxu0 0.0
      %531 = vmatpush1.msra.mxu0 %v473
      %532 = vmatprep.subr.mxu0 0.0
      %533 = vmatpush1.msra.mxu0 %v474
      %534 = vmatprep.subr.mxu0 0.0
      %535 = vmatpush1.msra.mxu0 %v475
      %536 = vmatprep.subr.mxu0 0.0
      %537 = vmatpush1.msra.mxu0 %v476
      %538 = vmatprep.subr.mxu0 0.0
      %539 = vmatpush1.msra.mxu0 %v477
      %540 = vmatprep.subr.mxu0 0.0
      %541 = vmatpush1.msra.mxu0 %v478
      %542 = vmatprep.subr.mxu0 0.0
      %543 = vmatpush1.msra.mxu0 %v479
      %544 = vmatprep.subr.mxu0 0.0
      %545 = vmatpush1.msra.mxu0 %v480
      %546 = vmatprep.subr.mxu0 0.0
      %547 = vmatpush1.msra.mxu0 %v481
      %548 = vmatprep.subr.mxu0 0.0
      %549 = vmatpush1.msra.mxu0 %v482
      %550 = vmatprep.subr.mxu0 0.0
      %551 = vmatpush1.msra.mxu0 %v483
      %552 = vmatprep.subr.mxu0 0.0
      %553 = vmatpush1.msra.mxu0 %v484
      %554 = vmatprep.subr.mxu0 0.0
      %555 = vmatpush1.msra.mxu0 %v485
      %556 = vmatprep.subr.mxu0 0.0
      %557 = vmatpush1.msra.mxu0 %v486
      %558 = vmatprep.subr.mxu0 0.0
      %559 = vmatpush1.msra.mxu0 %v487
      %560 = vmatprep.subr.mxu0 0.0
      %561 = vmatpush1.msra.mxu0 %v488
      %562 = vmatprep.subr.mxu0 0.0
      %563 = vmatpush1.msra.mxu0 %v489
      %564 = vmatprep.subr.mxu0 0.0
      %565 = vmatpush1.msra.mxu0 %v490
      %566 = vmatprep.subr.mxu0 0.0
      %567 = vmatpush1.msra.mxu0 %v491
      %568 = vmatprep.subr.mxu0 0.0
      %569 = vmatpush1.msra.mxu0 %v492
      %570 = vmatprep.subr.mxu0 0.0
      %571 = vmatpush1.msra.mxu0 %v493
      %572 = vmatprep.subr.mxu0 0.0
      %573 = vmatpush1.msra.mxu0 %v494
      %574 = vmatprep.subr.mxu0 0.0
      %575 = vmatpush1.msra.mxu0 %v495
      %576 = vmatprep.subr.mxu0 0.0
      %577 = vmatpush1.msra.mxu0 %v496
      %578 = vmatprep.subr.mxu0 0.0
      %579 = vmatpush1.msra.mxu0 %v497
      %580 = vmatprep.subr.mxu0 0.0
      %581 = vmatpush1.msra.mxu0 %v498
      %582 = vmatprep.mubr.f32.mxu0 %v509
      %583 = vmatmul.mubr.f32.gmra.mrb[0].mxu0 %v506
      %v584 = vpop.f32.mrb[0].mxu0
      %v585 = vadd.f32 0.0, %v584
      %v586 = vpop.f32.mrb[0].mxu0
      %587 = vmatprep.mubr.f32.mxu0 %v513
      %588 = vmatmul.mubr.f32.gmra.mrb[0].mxu0 %v511
      %v589 = vpop.f32.mrb[0].mxu0
      %v590 = vadd.f32 0.0, %v589
      %v591 = vpop.f32.mrb[0].mxu0
      %592 = vdwg.mxu0
      %v593 = vadd.f32 %v454, %v585
      %v594 = vadd.f32 %v459, %v590
      %v595 = vld [vmem:[#allocation2] sm:$0xf8]
      %v596 = vld [vmem:[#allocation2 + $0x8] sm:$0xf8]
      %v597 = vld [vmem:[#allocation2 + $0x20] sm:$0x7]
      %v598 = vld [vmem:[#allocation2 + $0x28] sm:$0x7]
      %s599 = scalar_lea.vmem %s0, 768
      %v600 = vld [vmem:[%s599] sm:$0xff]
      %v601 = vld [vmem:[%s599 + $0x8] sm:$0xff]
      %v602 = vld [vmem:[%s599 + $0x10] sm:$0xff]
      %v603 = vld [vmem:[%s599 + $0x18] sm:$0xff]
      %v604 = vld [vmem:[%s599 + $0x20] sm:$0xff]
      %v605 = vld [vmem:[%s599 + $0x28] sm:$0xff]
      %v606 = vld [vmem:[%s599 + $0x30] sm:$0xff]
      %v607 = vld [vmem:[%s599 + $0x38] sm:$0xff]
      %v608 = vld [vmem:[%s599 + $0x40] sm:$0xff]
      %v609 = vld [vmem:[%s599 + $0x48] sm:$0xff]
      %v610 = vld [vmem:[%s599 + $0x50] sm:$0xff]
      %v611 = vld [vmem:[%s599 + $0x58] sm:$0xff]
      %v612 = vld [vmem:[%s599 + $0x60] sm:$0xff]
      %v613 = vld [vmem:[%s599 + $0x68] sm:$0xff]
      %v614 = vld [vmem:[%s599 + $0x70] sm:$0xff]
      %v615 = vld [vmem:[%s599 + $0x78] sm:$0xff]
      %v616 = vld [vmem:[%s599 + $0x80] sm:$0xff]
      %v617 = vld [vmem:[%s599 + $0x88] sm:$0xff]
      %v618 = vld [vmem:[%s599 + $0x90] sm:$0xff]
      %v619 = vld [vmem:[%s599 + $0x98] sm:$0xff]
      %v620 = vld [vmem:[%s599 + $0xa0] sm:$0xff]
      %v621 = vld [vmem:[%s599 + $0xa8] sm:$0xff]
      %v622 = vld [vmem:[%s599 + $0xb0] sm:$0xff]
      %v623 = vld [vmem:[%s599 + $0xb8] sm:$0xff]
      %v624 = vld [vmem:[%s599 + $0xc0] sm:$0xff]
      %v625 = vld [vmem:[%s599 + $0xc8] sm:$0xff]
      %v626 = vld [vmem:[%s599 + $0xd0] sm:$0xff]
      %v627 = vld [vmem:[%s599 + $0xd8] sm:$0xff]
      %v628 = vld [vmem:[%s599 + $0xe0] sm:$0xff]
      %v629 = vld [vmem:[%s599 + $0xe8] sm:$0xff]
      %v630 = vld [vmem:[%s599 + $0xf0] sm:$0xff]
      %v631 = vld [vmem:[%s599 + $0xf8] sm:$0xff]
      %vm636 = vcmask 1044480
      %v637 = vrot.slane %v595, 3
      %v638 = vrot.slane %v254, 3
      %v639 = vsel %vm636, %v637, %v638
      %v640 = vrot.slane %v596, 3
      %v641 = vrot.slane %v255, 3
      %v642 = vsel %vm636, %v640, %v641
      %v643 = vrot.slane %v597, 3
      %v644 = vsel %vm636, %v638, %v643
      %v645 = vrot.slane %v598, 3
      %v646 = vsel %vm636, %v641, %v645
      %651 = vmatprep.subr.mxu0 0.0
      %652 = vmatpush1.msra.mxu0 %v600
      %653 = vmatprep.subr.mxu0 0.0
      %654 = vmatpush1.msra.mxu0 %v601
      %655 = vmatprep.subr.mxu0 0.0
      %656 = vmatpush1.msra.mxu0 %v602
      %657 = vmatprep.subr.mxu0 0.0
      %658 = vmatpush1.msra.mxu0 %v603
      %659 = vmatprep.subr.mxu0 0.0
      %660 = vmatpush1.msra.mxu0 %v604
      %661 = vmatprep.subr.mxu0 0.0
      %662 = vmatpush1.msra.mxu0 %v605
      %663 = vmatprep.subr.mxu0 0.0
      %664 = vmatpush1.msra.mxu0 %v606
      %665 = vmatprep.subr.mxu0 0.0
      %666 = vmatpush1.msra.mxu0 %v607
      %667 = vmatprep.subr.mxu0 0.0
      %668 = vmatpush1.msra.mxu0 %v608
      %669 = vmatprep.subr.mxu0 0.0
      %670 = vmatpush1.msra.mxu0 %v609
      %671 = vmatprep.subr.mxu0 0.0
      %672 = vmatpush1.msra.mxu0 %v610
      %673 = vmatprep.subr.mxu0 0.0
      %674 = vmatpush1.msra.mxu0 %v611
      %675 = vmatprep.subr.mxu0 0.0
      %676 = vmatpush1.msra.mxu0 %v612
      %677 = vmatprep.subr.mxu0 0.0
      %678 = vmatpush1.msra.mxu0 %v613
      %679 = vmatprep.subr.mxu0 0.0
      %680 = vmatpush1.msra.mxu0 %v614
      %681 = vmatprep.subr.mxu0 0.0
      %682 = vmatpush1.msra.mxu0 %v615
      %683 = vmatprep.subr.mxu0 0.0
      %684 = vmatpush1.msra.mxu0 %v616
      %685 = vmatprep.subr.mxu0 0.0
      %686 = vmatpush1.msra.mxu0 %v617
      %687 = vmatprep.subr.mxu0 0.0
      %688 = vmatpush1.msra.mxu0 %v618
      %689 = vmatprep.subr.mxu0 0.0
      %690 = vmatpush1.msra.mxu0 %v619
      %691 = vmatprep.subr.mxu0 0.0
      %692 = vmatpush1.msra.mxu0 %v620
      %693 = vmatprep.subr.mxu0 0.0
      %694 = vmatpush1.msra.mxu0 %v621
      %695 = vmatprep.subr.mxu0 0.0
      %696 = vmatpush1.msra.mxu0 %v622
      %697 = vmatprep.subr.mxu0 0.0
      %698 = vmatpush1.msra.mxu0 %v623
      %699 = vmatprep.subr.mxu0 0.0
      %700 = vmatpush1.msra.mxu0 %v624
      %701 = vmatprep.subr.mxu0 0.0
      %702 = vmatpush1.msra.mxu0 %v625
      %703 = vmatprep.subr.mxu0 0.0
      %704 = vmatpush1.msra.mxu0 %v626
      %705 = vmatprep.subr.mxu0 0.0
      %706 = vmatpush1.msra.mxu0 %v627
      %707 = vmatprep.subr.mxu0 0.0
      %708 = vmatpush1.msra.mxu0 %v628
      %709 = vmatprep.subr.mxu0 0.0
      %710 = vmatpush1.msra.mxu0 %v629
      %711 = vmatprep.subr.mxu0 0.0
      %712 = vmatpush1.msra.mxu0 %v630
      %713 = vmatprep.subr.mxu0 0.0
      %714 = vmatpush1.msra.mxu0 %v631
      %715 = vmatprep.mubr.f32.mxu0 %v642
      %716 = vmatmul.mubr.f32.gmra.mrb[0].mxu0 %v639
      %v717 = vpop.f32.mrb[0].mxu0
      %v718 = vadd.f32 0.0, %v717
      %v719 = vpop.f32.mrb[0].mxu0
      %720 = vmatprep.mubr.f32.mxu0 %v646
      %721 = vmatmul.mubr.f32.gmra.mrb[0].mxu0 %v644
      %v722 = vpop.f32.mrb[0].mxu0
      %v723 = vadd.f32 0.0, %v722
      %v724 = vpop.f32.mrb[0].mxu0
      %725 = vdwg.mxu0
      %v726 = vadd.f32 %v593, %v718
      %v727 = vadd.f32 %v594, %v723
      %v728 = vld [vmem:[#allocation2] sm:$0xf0]
      %v729 = vld [vmem:[#allocation2 + $0x8] sm:$0xf0]
      %v730 = vld [vmem:[#allocation2 + $0x20] sm:$0xf]
      %v731 = vld [vmem:[#allocation2 + $0x28] sm:$0xf]
      %s732 = scalar_lea.vmem %s0, 1024
      %v733 = vld [vmem:[%s732] sm:$0xff]
      %v734 = vld [vmem:[%s732 + $0x8] sm:$0xff]
      %v735 = vld [vmem:[%s732 + $0x10] sm:$0xff]
      %v736 = vld [vmem:[%s732 + $0x18] sm:$0xff]
      %v737 = vld [vmem:[%s732 + $0x20] sm:$0xff]
      %v738 = vld [vmem:[%s732 + $0x28] sm:$0xff]
      %v739 = vld [vmem:[%s732 + $0x30] sm:$0xff]
      %v740 = vld [vmem:[%s732 + $0x38] sm:$0xff]
      %v741 = vld [vmem:[%s732 + $0x40] sm:$0xff]
      %v742 = vld [vmem:[%s732 + $0x48] sm:$0xff]
      %v743 = vld [vmem:[%s732 + $0x50] sm:$0xff]
      %v744 = vld [vmem:[%s732 + $0x58] sm:$0xff]
      %v745 = vld [vmem:[%s732 + $0x60] sm:$0xff]
      %v746 = vld [vmem:[%s732 + $0x68] sm:$0xff]
      %v747 = vld [vmem:[%s732 + $0x70] sm:$0xff]
      %v748 = vld [vmem:[%s732 + $0x78] sm:$0xff]
      %v749 = vld [vmem:[%s732 + $0x80] sm:$0xff]
      %v750 = vld [vmem:[%s732 + $0x88] sm:$0xff]
      %v751 = vld [vmem:[%s732 + $0x90] sm:$0xff]
      %v752 = vld [vmem:[%s732 + $0x98] sm:$0xff]
      %v753 = vld [vmem:[%s732 + $0xa0] sm:$0xff]
      %v754 = vld [vmem:[%s732 + $0xa8] sm:$0xff]
      %v755 = vld [vmem:[%s732 + $0xb0] sm:$0xff]
      %v756 = vld [vmem:[%s732 + $0xb8] sm:$0xff]
      %v757 = vld [vmem:[%s732 + $0xc0] sm:$0xff]
      %v758 = vld [vmem:[%s732 + $0xc8] sm:$0xff]
      %v759 = vld [vmem:[%s732 + $0xd0] sm:$0xff]
      %v760 = vld [vmem:[%s732 + $0xd8] sm:$0xff]
      %v761 = vld [vmem:[%s732 + $0xe0] sm:$0xff]
      %v762 = vld [vmem:[%s732 + $0xe8] sm:$0xff]
      %v763 = vld [vmem:[%s732 + $0xf0] sm:$0xff]
      %v764 = vld [vmem:[%s732 + $0xf8] sm:$0xff]
      %vm769 = vcmask 1043456
      %v770 = vrot.slane %v728, 4
      %v771 = vrot.slane %v254, 4
      %v772 = vsel %vm769, %v770, %v771
      %v773 = vrot.slane %v729, 4
      %v774 = vrot.slane %v255, 4
      %v775 = vsel %vm769, %v773, %v774
      %v776 = vrot.slane %v730, 4
      %v777 = vsel %vm769, %v771, %v776
      %v778 = vrot.slane %v731, 4
      %v779 = vsel %vm769, %v774, %v778
      %784 = vmatprep.subr.mxu0 0.0
      %785 = vmatpush1.msra.mxu0 %v733
      %786 = vmatprep.subr.mxu0 0.0
      %787 = vmatpush1.msra.mxu0 %v734
      %788 = vmatprep.subr.mxu0 0.0
      %789 = vmatpush1.msra.mxu0 %v735
      %790 = vmatprep.subr.mxu0 0.0
      %791 = vmatpush1.msra.mxu0 %v736
      %792 = vmatprep.subr.mxu0 0.0
      %793 = vmatpush1.msra.mxu0 %v737
      %794 = vmatprep.subr.mxu0 0.0
      %795 = vmatpush1.msra.mxu0 %v738
      %796 = vmatprep.subr.mxu0 0.0
      %797 = vmatpush1.msra.mxu0 %v739
      %798 = vmatprep.subr.mxu0 0.0
      %799 = vmatpush1.msra.mxu0 %v740
      %800 = vmatprep.subr.mxu0 0.0
      %801 = vmatpush1.msra.mxu0 %v741
      %802 = vmatprep.subr.mxu0 0.0
      %803 = vmatpush1.msra.mxu0 %v742
      %804 = vmatprep.subr.mxu0 0.0
      %805 = vmatpush1.msra.mxu0 %v743
      %806 = vmatprep.subr.mxu0 0.0
      %807 = vmatpush1.msra.mxu0 %v744
      %808 = vmatprep.subr.mxu0 0.0
      %809 = vmatpush1.msra.mxu0 %v745
      %810 = vmatprep.subr.mxu0 0.0
      %811 = vmatpush1.msra.mxu0 %v746
      %812 = vmatprep.subr.mxu0 0.0
      %813 = vmatpush1.msra.mxu0 %v747
      %814 = vmatprep.subr.mxu0 0.0
      %815 = vmatpush1.msra.mxu0 %v748
      %816 = vmatprep.subr.mxu0 0.0
      %817 = vmatpush1.msra.mxu0 %v749
      %818 = vmatprep.subr.mxu0 0.0
      %819 = vmatpush1.msra.mxu0 %v750
      %820 = vmatprep.subr.mxu0 0.0
      %821 = vmatpush1.msra.mxu0 %v751
      %822 = vmatprep.subr.mxu0 0.0
      %823 = vmatpush1.msra.mxu0 %v752
      %824 = vmatprep.subr.mxu0 0.0
      %825 = vmatpush1.msra.mxu0 %v753
      %826 = vmatprep.subr.mxu0 0.0
      %827 = vmatpush1.msra.mxu0 %v754
      %828 = vmatprep.subr.mxu0 0.0
      %829 = vmatpush1.msra.mxu0 %v755
      %830 = vmatprep.subr.mxu0 0.0
      %831 = vmatpush1.msra.mxu0 %v756
      %832 = vmatprep.subr.mxu0 0.0
      %833 = vmatpush1.msra.mxu0 %v757
      %834 = vmatprep.subr.mxu0 0.0
      %835 = vmatpush1.msra.mxu0 %v758
      %836 = vmatprep.subr.mxu0 0.0
      %837 = vmatpush1.msra.mxu0 %v759
      %838 = vmatprep.subr.mxu0 0.0
      %839 = vmatpush1.msra.mxu0 %v760
      %840 = vmatprep.subr.mxu0 0.0
      %841 = vmatpush1.msra.mxu0 %v761
      %842 = vmatprep.subr.mxu0 0.0
      %843 = vmatpush1.msra.mxu0 %v762
      %844 = vmatprep.subr.mxu0 0.0
      %845 = vmatpush1.msra.mxu0 %v763
      %846 = vmatprep.subr.mxu0 0.0
      %847 = vmatpush1.msra.mxu0 %v764
      %848 = vmatprep.mubr.f32.mxu0 %v775
      %849 = vmatmul.mubr.f32.gmra.mrb[0].mxu0 %v772
      %v850 = vpop.f32.mrb[0].mxu0
      %v851 = vadd.f32 0.0, %v850
      %v852 = vpop.f32.mrb[0].mxu0
      %853 = vmatprep.mubr.f32.mxu0 %v779
      %854 = vmatmul.mubr.f32.gmra.mrb[0].mxu0 %v777
      %v855 = vpop.f32.mrb[0].mxu0
      %v856 = vadd.f32 0.0, %v855
      %v857 = vpop.f32.mrb[0].mxu0
      %858 = vdwg.mxu0
      %v859 = vadd.f32 %v726, %v851
      %v860 = vadd.f32 %v727, %v856
      %v861 = vld [vmem:[#allocation2] sm:$0xe0]
      %v862 = vld [vmem:[#allocation2 + $0x8] sm:$0xe0]
      %v863 = vld [vmem:[#allocation2 + $0x20] sm:$0x1f]
      %v864 = vld [vmem:[#allocation2 + $0x28] sm:$0x1f]
      %s865 = scalar_lea.vmem %s0, 1280
      %v866 = vld [vmem:[%s865] sm:$0xff]
      %v867 = vld [vmem:[%s865 + $0x8] sm:$0xff]
      %v868 = vld [vmem:[%s865 + $0x10] sm:$0xff]
      %v869 = vld [vmem:[%s865 + $0x18] sm:$0xff]
      %v870 = vld [vmem:[%s865 + $0x20] sm:$0xff]
      %v871 = vld [vmem:[%s865 + $0x28] sm:$0xff]
      %v872 = vld [vmem:[%s865 + $0x30] sm:$0xff]
      %v873 = vld [vmem:[%s865 + $0x38] sm:$0xff]
      %v874 = vld [vmem:[%s865 + $0x40] sm:$0xff]
      %v875 = vld [vmem:[%s865 + $0x48] sm:$0xff]
      %v876 = vld [vmem:[%s865 + $0x50] sm:$0xff]
      %v877 = vld [vmem:[%s865 + $0x58] sm:$0xff]
      %v878 = vld [vmem:[%s865 + $0x60] sm:$0xff]
      %v879 = vld [vmem:[%s865 + $0x68] sm:$0xff]
      %v880 = vld [vmem:[%s865 + $0x70] sm:$0xff]
      %v881 = vld [vmem:[%s865 + $0x78] sm:$0xff]
      %v882 = vld [vmem:[%s865 + $0x80] sm:$0xff]
      %v883 = vld [vmem:[%s865 + $0x88] sm:$0xff]
      %v884 = vld [vmem:[%s865 + $0x90] sm:$0xff]
      %v885 = vld [vmem:[%s865 + $0x98] sm:$0xff]
      %v886 = vld [vmem:[%s865 + $0xa0] sm:$0xff]
      %v887 = vld [vmem:[%s865 + $0xa8] sm:$0xff]
      %v888 = vld [vmem:[%s865 + $0xb0] sm:$0xff]
      %v889 = vld [vmem:[%s865 + $0xb8] sm:$0xff]
      %v890 = vld [vmem:[%s865 + $0xc0] sm:$0xff]
      %v891 = vld [vmem:[%s865 + $0xc8] sm:$0xff]
      %v892 = vld [vmem:[%s865 + $0xd0] sm:$0xff]
      %v893 = vld [vmem:[%s865 + $0xd8] sm:$0xff]
      %v894 = vld [vmem:[%s865 + $0xe0] sm:$0xff]
      %v895 = vld [vmem:[%s865 + $0xe8] sm:$0xff]
      %v896 = vld [vmem:[%s865 + $0xf0] sm:$0xff]
      %v897 = vld [vmem:[%s865 + $0xf8] sm:$0xff]
      %v902 = vrot.slane %v861, 5
      %v903 = vrot.slane %v254, 5
      %v904 = vsel %vm191, %v902, %v903
      %v905 = vrot.slane %v862, 5
      %v906 = vrot.slane %v255, 5
      %v907 = vsel %vm191, %v905, %v906
      %v908 = vrot.slane %v863, 5
      %v909 = vsel %vm191, %v903, %v908
      %v910 = vrot.slane %v864, 5
      %v911 = vsel %vm191, %v906, %v910
      %916 = vmatprep.subr.mxu0 0.0
      %917 = vmatpush1.msra.mxu0 %v866
      %918 = vmatprep.subr.mxu0 0.0
      %919 = vmatpush1.msra.mxu0 %v867
      %920 = vmatprep.subr.mxu0 0.0
      %921 = vmatpush1.msra.mxu0 %v868
      %922 = vmatprep.subr.mxu0 0.0
      %923 = vmatpush1.msra.mxu0 %v869
      %924 = vmatprep.subr.mxu0 0.0
      %925 = vmatpush1.msra.mxu0 %v870
      %926 = vmatprep.subr.mxu0 0.0
      %927 = vmatpush1.msra.mxu0 %v871
      %928 = vmatprep.subr.mxu0 0.0
      %929 = vmatpush1.msra.mxu0 %v872
      %930 = vmatprep.subr.mxu0 0.0
      %931 = vmatpush1.msra.mxu0 %v873
      %932 = vmatprep.subr.mxu0 0.0
      %933 = vmatpush1.msra.mxu0 %v874
      %934 = vmatprep.subr.mxu0 0.0
      %935 = vmatpush1.msra.mxu0 %v875
      %936 = vmatprep.subr.mxu0 0.0
      %937 = vmatpush1.msra.mxu0 %v876
      %938 = vmatprep.subr.mxu0 0.0
      %939 = vmatpush1.msra.mxu0 %v877
      %940 = vmatprep.subr.mxu0 0.0
      %941 = vmatpush1.msra.mxu0 %v878
      %942 = vmatprep.subr.mxu0 0.0
      %943 = vmatpush1.msra.mxu0 %v879
      %944 = vmatprep.subr.mxu0 0.0
      %945 = vmatpush1.msra.mxu0 %v880
      %946 = vmatprep.subr.mxu0 0.0
      %947 = vmatpush1.msra.mxu0 %v881
      %948 = vmatprep.subr.mxu0 0.0
      %949 = vmatpush1.msra.mxu0 %v882
      %950 = vmatprep.subr.mxu0 0.0
      %951 = vmatpush1.msra.mxu0 %v883
      %952 = vmatprep.subr.mxu0 0.0
      %953 = vmatpush1.msra.mxu0 %v884
      %954 = vmatprep.subr.mxu0 0.0
      %955 = vmatpush1.msra.mxu0 %v885
      %956 = vmatprep.subr.mxu0 0.0
      %957 = vmatpush1.msra.mxu0 %v886
      %958 = vmatprep.subr.mxu0 0.0
      %959 = vmatpush1.msra.mxu0 %v887
      %960 = vmatprep.subr.mxu0 0.0
      %961 = vmatpush1.msra.mxu0 %v888
      %962 = vmatprep.subr.mxu0 0.0
      %963 = vmatpush1.msra.mxu0 %v889
      %964 = vmatprep.subr.mxu0 0.0
      %965 = vmatpush1.msra.mxu0 %v890
      %966 = vmatprep.subr.mxu0 0.0
      %967 = vmatpush1.msra.mxu0 %v891
      %968 = vmatprep.subr.mxu0 0.0
      %969 = vmatpush1.msra.mxu0 %v892
      %970 = vmatprep.subr.mxu0 0.0
      %971 = vmatpush1.msra.mxu0 %v893
      %972 = vmatprep.subr.mxu0 0.0
      %973 = vmatpush1.msra.mxu0 %v894
      %974 = vmatprep.subr.mxu0 0.0
      %975 = vmatpush1.msra.mxu0 %v895
      %976 = vmatprep.subr.mxu0 0.0
      %977 = vmatpush1.msra.mxu0 %v896
      %978 = vmatprep.subr.mxu0 0.0
      %979 = vmatpush1.msra.mxu0 %v897
      %980 = vmatprep.mubr.f32.mxu0 %v907
      %981 = vmatmul.mubr.f32.gmra.mrb[0].mxu0 %v904
      %v982 = vpop.f32.mrb[0].mxu0
      %v983 = vadd.f32 0.0, %v982
      %v984 = vpop.f32.mrb[0].mxu0
      %985 = vmatprep.mubr.f32.mxu0 %v911
      %986 = vmatmul.mubr.f32.gmra.mrb[0].mxu0 %v909
      %v987 = vpop.f32.mrb[0].mxu0
      %v988 = vadd.f32 0.0, %v987
      %v989 = vpop.f32.mrb[0].mxu0
      %990 = vdwg.mxu0
      %v991 = vadd.f32 %v859, %v983
      %v992 = vadd.f32 %v860, %v988
      %v993 = vld [vmem:[#allocation2] sm:$0xc0]
      %v994 = vld [vmem:[#allocation2 + $0x8] sm:$0xc0]
      %v995 = vld [vmem:[#allocation2 + $0x20] sm:$0x3f]
      %v996 = vld [vmem:[#allocation2 + $0x28] sm:$0x3f]
      %s997 = scalar_lea.vmem %s0, 1536
      %v998 = vld [vmem:[%s997] sm:$0xff]
      %v999 = vld [vmem:[%s997 + $0x8] sm:$0xff]
      %v1000 = vld [vmem:[%s997 + $0x10] sm:$0xff]
      %v1001 = vld [vmem:[%s997 + $0x18] sm:$0xff]
      %v1002 = vld [vmem:[%s997 + $0x20] sm:$0xff]
      %v1003 = vld [vmem:[%s997 + $0x28] sm:$0xff]
      %v1004 = vld [vmem:[%s997 + $0x30] sm:$0xff]
      %v1005 = vld [vmem:[%s997 + $0x38] sm:$0xff]
      %v1006 = vld [vmem:[%s997 + $0x40] sm:$0xff]
      %v1007 = vld [vmem:[%s997 + $0x48] sm:$0xff]
      %v1008 = vld [vmem:[%s997 + $0x50] sm:$0xff]
      %v1009 = vld [vmem:[%s997 + $0x58] sm:$0xff]
      %v1010 = vld [vmem:[%s997 + $0x60] sm:$0xff]
      %v1011 = vld [vmem:[%s997 + $0x68] sm:$0xff]
      %v1012 = vld [vmem:[%s997 + $0x70] sm:$0xff]
      %v1013 = vld [vmem:[%s997 + $0x78] sm:$0xff]
      %v1014 = vld [vmem:[%s997 + $0x80] sm:$0xff]
      %v1015 = vld [vmem:[%s997 + $0x88] sm:$0xff]
      %v1016 = vld [vmem:[%s997 + $0x90] sm:$0xff]
      %v1017 = vld [vmem:[%s997 + $0x98] sm:$0xff]
      %v1018 = vld [vmem:[%s997 + $0xa0] sm:$0xff]
      %v1019 = vld [vmem:[%s997 + $0xa8] sm:$0xff]
      %v1020 = vld [vmem:[%s997 + $0xb0] sm:$0xff]
      %v1021 = vld [vmem:[%s997 + $0xb8] sm:$0xff]
      %v1022 = vld [vmem:[%s997 + $0xc0] sm:$0xff]
      %v1023 = vld [vmem:[%s997 + $0xc8] sm:$0xff]
      %v1024 = vld [vmem:[%s997 + $0xd0] sm:$0xff]
      %v1025 = vld [vmem:[%s997 + $0xd8] sm:$0xff]
      %v1026 = vld [vmem:[%s997 + $0xe0] sm:$0xff]
      %v1027 = vld [vmem:[%s997 + $0xe8] sm:$0xff]
      %v1028 = vld [vmem:[%s997 + $0xf0] sm:$0xff]
      %v1029 = vld [vmem:[%s997 + $0xf8] sm:$0xff]
      %vm1034 = vcmask 1041408
      %v1035 = vrot.slane %v993, 6
      %v1036 = vrot.slane %v254, 6
      %v1037 = vsel %vm1034, %v1035, %v1036
      %v1038 = vrot.slane %v994, 6
      %v1039 = vrot.slane %v255, 6
      %v1040 = vsel %vm1034, %v1038, %v1039
      %v1041 = vrot.slane %v995, 6
      %v1042 = vsel %vm1034, %v1036, %v1041
      %v1043 = vrot.slane %v996, 6
      %v1044 = vsel %vm1034, %v1039, %v1043
      %1049 = vmatprep.subr.mxu0 0.0
      %1050 = vmatpush1.msra.mxu0 %v998
      %1051 = vmatprep.subr.mxu0 0.0
      %1052 = vmatpush1.msra.mxu0 %v999
      %1053 = vmatprep.subr.mxu0 0.0
      %1054 = vmatpush1.msra.mxu0 %v1000
      %1055 = vmatprep.subr.mxu0 0.0
      %1056 = vmatpush1.msra.mxu0 %v1001
      %1057 = vmatprep.subr.mxu0 0.0
      %1058 = vmatpush1.msra.mxu0 %v1002
      %1059 = vmatprep.subr.mxu0 0.0
      %1060 = vmatpush1.msra.mxu0 %v1003
      %1061 = vmatprep.subr.mxu0 0.0
      %1062 = vmatpush1.msra.mxu0 %v1004
      %1063 = vmatprep.subr.mxu0 0.0
      %1064 = vmatpush1.msra.mxu0 %v1005
      %1065 = vmatprep.subr.mxu0 0.0
      %1066 = vmatpush1.msra.mxu0 %v1006
      %1067 = vmatprep.subr.mxu0 0.0
      %1068 = vmatpush1.msra.mxu0 %v1007
      %1069 = vmatprep.subr.mxu0 0.0
      %1070 = vmatpush1.msra.mxu0 %v1008
      %1071 = vmatprep.subr.mxu0 0.0
      %1072 = vmatpush1.msra.mxu0 %v1009
      %1073 = vmatprep.subr.mxu0 0.0
      %1074 = vmatpush1.msra.mxu0 %v1010
      %1075 = vmatprep.subr.mxu0 0.0
      %1076 = vmatpush1.msra.mxu0 %v1011
      %1077 = vmatprep.subr.mxu0 0.0
      %1078 = vmatpush1.msra.mxu0 %v1012
      %1079 = vmatprep.subr.mxu0 0.0
      %1080 = vmatpush1.msra.mxu0 %v1013
      %1081 = vmatprep.subr.mxu0 0.0
      %1082 = vmatpush1.msra.mxu0 %v1014
      %1083 = vmatprep.subr.mxu0 0.0
      %1084 = vmatpush1.msra.mxu0 %v1015
      %1085 = vmatprep.subr.mxu0 0.0
      %1086 = vmatpush1.msra.mxu0 %v1016
      %1087 = vmatprep.subr.mxu0 0.0
      %1088 = vmatpush1.msra.mxu0 %v1017
      %1089 = vmatprep.subr.mxu0 0.0
      %1090 = vmatpush1.msra.mxu0 %v1018
      %1091 = vmatprep.subr.mxu0 0.0
      %1092 = vmatpush1.msra.mxu0 %v1019
      %1093 = vmatprep.subr.mxu0 0.0
      %1094 = vmatpush1.msra.mxu0 %v1020
      %1095 = vmatprep.subr.mxu0 0.0
      %1096 = vmatpush1.msra.mxu0 %v1021
      %1097 = vmatprep.subr.mxu0 0.0
      %1098 = vmatpush1.msra.mxu0 %v1022
      %1099 = vmatprep.subr.mxu0 0.0
      %1100 = vmatpush1.msra.mxu0 %v1023
      %1101 = vmatprep.subr.mxu0 0.0
      %1102 = vmatpush1.msra.mxu0 %v1024
      %1103 = vmatprep.subr.mxu0 0.0
      %1104 = vmatpush1.msra.mxu0 %v1025
      %1105 = vmatprep.subr.mxu0 0.0
      %1106 = vmatpush1.msra.mxu0 %v1026
      %1107 = vmatprep.subr.mxu0 0.0
      %1108 = vmatpush1.msra.mxu0 %v1027
      %1109 = vmatprep.subr.mxu0 0.0
      %1110 = vmatpush1.msra.mxu0 %v1028
      %1111 = vmatprep.subr.mxu0 0.0
      %1112 = vmatpush1.msra.mxu0 %v1029
      %1113 = vmatprep.mubr.f32.mxu0 %v1040
      %1114 = vmatmul.mubr.f32.gmra.mrb[0].mxu0 %v1037
      %v1115 = vpop.f32.mrb[0].mxu0
      %v1116 = vadd.f32 0.0, %v1115
      %v1117 = vpop.f32.mrb[0].mxu0
      %1118 = vmatprep.mubr.f32.mxu0 %v1044
      %1119 = vmatmul.mubr.f32.gmra.mrb[0].mxu0 %v1042
      %v1120 = vpop.f32.mrb[0].mxu0
      %v1121 = vadd.f32 0.0, %v1120
      %v1122 = vpop.f32.mrb[0].mxu0
      %1123 = vdwg.mxu0
      %v1124 = vadd.f32 %v991, %v1116
      %v1125 = vadd.f32 %v992, %v1121
      %v1126 = vxor.u32 %v1124, 2147483648
      %v1127 = vxor.u32 %v1125, 2147483648
      %v1128 = vmul.f32 %v1126, 1.442695
      %v1129 = vpow.pop %v1128
      %v1130 = vmul.f32 %v1127, 1.442695
      %v1131 = vpow.pop %v1130
      %v1132 = vadd.f32 %v1129, 1.0
      %v1133 = vadd.f32 %v1131, 1.0
      %v1134 = vrcp.pop %v1132
      %v1135 = vmul.f32 1.0, %v1134
      %v1136 = vrcp.pop %v1133
      %v1137 = vmul.f32 1.0, %v1136
      %1138 = vst [vmem:[%s143] sm:$0xff] %v1135
      %1139 = vst [vmem:[%s143 + $0x8] sm:$0xff] %v1137
      %p1140 = scmp.lt.s32.totalorder %s13, 1
      %s1141 = scalar_select %p1140, %s13, 1
      %s1142 = smul.addr %s1141, 2
      %s1143 = smul.addr %s1142, 8
      %s1144 = scalar_lea.vmem %s2, %s1143
      // Predicated region
      $region29: #{spatial_attention.1} parent=27 // pred_check
        %p1145 = pneg %p78
      $region30: #{spatial_attention.1} parent=27 // pred_check_branch
        %1147 = sbr.rel (%p1145) target = $region32
      $region31: #{spatial_attention.1} parent=27 // pred_region
        _
      $region32: #{spatial_attention.1} parent=27 // pred_fallthru
        _
    $region28: #{spatial_attention.1} parent=5 // pred_fallthru
      _
    %p1148 = scmp.le.s32.totalorder 2, %s8
    // Predicated region
    $region33: #{spatial_attention.1} parent=5 // pred_check
      %p1149 = pneg %p1148
    $region34: #{spatial_attention.1} parent=5 // pred_check_branch
      %1151 = sbr.rel (%p1149) target = $region36
    $region35: #{spatial_attention.1} parent=5 // pred_region
      %s1152 = ssub.s32 %s8, 2
      // Predicated region
      $region37: #{spatial_attention.1} parent=35 // pred_check
        %p1153 = pneg %p84
      $region38: #{spatial_attention.1} parent=35 // pred_check_branch
        %1155 = sbr.rel (%p1153) target = $region40
      $region39: #{spatial_attention.1} parent=35 // pred_region
        %p1156 = scmp.lt.s32.totalorder %s14, 1
        %s1157 = scalar_select %p1156, %s14, 1
        %s1158 = smul.addr %s1157, 2
        %s1159 = smul.addr %s1158, 8
        %s1160 = scalar_lea.vmem %s2, %s1159
      $region40: #{spatial_attention.1} parent=35 // pred_fallthru
        _
    $region36: #{spatial_attention.1} parent=5 // pred_fallthru
      _
  $region6: #{spatial_attention.1} parent=0 // loop_footer
    %s12 = sadd.s32 1, %s8
  $region7: #{spatial_attention.1} parent=0 // loop_footer_branch
    %7 = sbr.rel target = $region3
  $region8: #{spatial_attention.1} parent=0 // loop_exit
    _

</llo_original>
